<compile_context>
chip_gen: v6e
topology: v6e:2x2x1
jax: 0.10.0
libtpu: 0.0.40
codegen_flags: <defaults>
</compile_context>

<pallas_src>
import jax
import jax.numpy as jnp
from jax.experimental import pallas as pl
from jax.experimental.pallas import tpu as pltpu

PATCH = 8
IN_CHANNELS = 4
EMBED_DIM = 32
HEAD_DIM = 64
N_BLOCK = 8          # batch rows per grid step (megacore-parallel axis)
LANE = 128           # output slab lane width (vreg lane count)


# ----------------------------- Pallas kernel ------------------------------- #

def _fused_kernel(patches_ref, mask_ref, w_cat_ref, b_cat_ref,
                  w_head_ref, b_head_ref, o_ref):
    """Fused backbone (patch-embed + pool + attention) and head.

    patches: (NB*T, Pd) bf16   token-padded patches, flattened (zeros for pad)
    mask:    (NB, T)    f32    1.0 for valid tokens, 0.0 for padded tokens
    w_cat:   (Pd, D+1)  bf16   [W_patch | W_patch @ q^T]
    b_cat:   (1, D+1)   f32    [b_patch | b_patch @ q^T]
    w_head:  (D, K) f32, b_head: (1, K) f32
    o:       (NB, SLAB) f32    packed [head(K) | feat(D) | attn(T) | zero-pad]
    """
    nb, t = mask_ref.shape
    d, k = w_head_ref.shape
    slab_w = o_ref.shape[-1]

    # --- single 2-D MXU matmul producing tokens AND attention scores at once.
    ts = jnp.dot(patches_ref[...], w_cat_ref[...],
                 preferred_element_type=jnp.float32)
    ts = ts + b_cat_ref[...]                       # (nb*t, d+1), f32
    ts = ts.reshape(nb, t, d + 1)

    tok = ts[:, :, :d]                             # (nb, t, d)
    scores = jnp.sum(ts[:, :, d:], axis=-1)        # (nb, t)  == tok . q

    m2 = mask_ref[...]                             # (nb, t)
    m3 = m2[:, :, None]                            # (nb, t, 1)

    # --- masked mean-pool over tokens -> backbone feature (_out).
    cnt = jnp.maximum(jnp.sum(m2, axis=-1, keepdims=True), 1.0)   # (nb, 1)
    feat = jnp.sum(tok * m3, axis=1) / cnt                        # (nb, d)

    # --- masked, numerically-stable softmax over tokens -> attention map.
    s = jnp.where(m2 > 0.0, scores, -1e30)
    s = s - jnp.max(s, axis=-1, keepdims=True)
    e = jnp.exp(s) * m2
    denom = jnp.maximum(jnp.sum(e, axis=-1, keepdims=True), 1e-30)
    attn = e / denom                                              # (nb, t)

    # --- head projection (MXU).
    head = jnp.dot(feat, w_head_ref[...],
                   preferred_element_type=jnp.float32) + b_head_ref[...]

    # --- lane-dense packed output slab, ONE unmasked full-width store.
    pad = slab_w - (k + d + t)
    o_ref[...] = jnp.concatenate(
        [head, feat, attn, jnp.zeros((nb, pad), jnp.float32)], axis=-1)


# ------------------------------ JAX wrappers ------------------------------- #

def _extract_patches(x_nchw):
    """NCHW -> (N, T, PATCH*PATCH*C) non-overlapping patches (glue, not hot path)."""
    n, c, h, w = x_nchw.shape
    th, tw = h // PATCH, w // PATCH
    p = x_nchw.reshape(n, c, th, PATCH, tw, PATCH)
    p = p.transpose(0, 2, 4, 3, 5, 1).reshape(n, th * tw, PATCH * PATCH * c)
    return p


def fused_forward(patches, tok_mask, w_cat, b_cat, w_head, b_head):
    """One pallas_call for backbone + head over the whole (token-padded) batch."""
    n, t, pd = patches.shape
    d, k = w_head.shape
    d1 = w_cat.shape[1]
    slab_w = ((k + d + t + LANE - 1) // LANE) * LANE

    n_pad = ((n + N_BLOCK - 1) // N_BLOCK) * N_BLOCK
    if n_pad != n:
        patches = jnp.pad(patches, ((0, n_pad - n), (0, 0), (0, 0)))
        tok_mask = jnp.pad(tok_mask, ((0, n_pad - n), (0, 0)))

    # bf16 operands for the full-rate MXU path; halves patch DMA bytes too.
    patches_flat = patches.reshape(n_pad * t, pd).astype(jnp.bfloat16)
    w_cat_bf16 = w_cat.astype(jnp.bfloat16)

    slab = pl.pallas_call(
        _fused_kernel,
        out_shape=jax.ShapeDtypeStruct((n_pad, slab_w), jnp.float32),
        grid_spec=pltpu.PrefetchScalarGridSpec(
            num_scalar_prefetch=0,
            grid=(n_pad // N_BLOCK,),
            in_specs=[
                pl.BlockSpec((N_BLOCK * t, pd), lambda i: (i, 0)),
                pl.BlockSpec((N_BLOCK, t), lambda i: (i, 0)),
                pl.BlockSpec((pd, d1), lambda i: (0, 0)),
                pl.BlockSpec((1, d1), lambda i: (0, 0)),
                pl.BlockSpec((d, k), lambda i: (0, 0)),
                pl.BlockSpec((1, k), lambda i: (0, 0)),
            ],
            out_specs=pl.BlockSpec((N_BLOCK, slab_w), lambda i: (i, 0)),
        ),
        compiler_params=pltpu.CompilerParams(
            dimension_semantics=("parallel",)),
    )(patches_flat, tok_mask, w_cat_bf16, b_cat, w_head, b_head)
    return slab[:n]


class MultiCropWrapperMICM:
    """JAX/Pallas port of MultiCropWrapper_micm.forward."""

    def __init__(self, params):
        w_patch = params["w_patch"].astype(jnp.float32)
        b_patch = params["b_patch"].astype(jnp.float32)
        q = params["q"].astype(jnp.float32)
        # Fold the attention-score projection q into the patch-embed weight so a
        # single MXU pass produces both tokens and scores (done once, off hot path).
        self.w_cat = jnp.concatenate([w_patch, w_patch @ q.T], axis=1)  # (Pd, D+1)
        self.b_cat = jnp.concatenate([b_patch, b_patch @ q.T], axis=1)  # (1, D+1)
        self.w_head = params["w_head"].astype(jnp.float32)
        self.b_head = params["b_head"].astype(jnp.float32)

    def __call__(self, x, mask=None, return_backbone_feat=False,
                 return_attention=False, **kwargs):
        if not isinstance(x, (list, tuple)):
            x = [x]
            mask = [mask] if mask is not None else None

        # torch.cumsum(torch.unique_consecutive([inp.shape[-1]...], counts)[1], 0)
        res = [int(inp.shape[-1]) for inp in x]
        idx_crops = [i + 1 for i in range(len(res))
                     if i == len(res) - 1 or res[i + 1] != res[i]]

        # Group crops by consecutive equal resolution (original grouping order).
        groups, start = [], 0
        for end in idx_crops:
            groups.append(jnp.concatenate(list(x[start:end]), axis=0))
            start = end
        if mask is not None:
            # TODO(synk): mask is grouped like the original but the synthetic
            # backbone has no mask-token path, so it is not consumed.
            pass

        # Pack ALL groups into one token-padded batch; a single fused Pallas call
        # replaces the per-resolution backbone calls + the separate head call.
        group_patches = [_extract_patches(g) for g in groups]
        t_max = max(p.shape[1] for p in group_patches)
        padded, masks = [], []
        for p in group_patches:
            ng, tg, _ = p.shape
            padded.append(jnp.pad(p, ((0, 0), (0, t_max - tg), (0, 0))))
            masks.append(jnp.concatenate(
                [jnp.ones((ng, tg), jnp.float32),
                 jnp.zeros((ng, t_max - tg), jnp.float32)], axis=1))
        patches_all = jnp.concatenate(padded, axis=0)   # (N_total, T_max, Pd)
        mask_all = jnp.concatenate(masks, axis=0)       # (N_total, T_max)
        n_total = patches_all.shape[0]

        slab = fused_forward(patches_all, mask_all, self.w_cat, self.b_cat,
                             self.w_head, self.b_head)

        k, d = HEAD_DIM, EMBED_DIM
        output_ = slab[:, :k]                          # head(concatenated feats)
        output = slab[:, k:k + d]                      # concatenated backbone feats
        attn_all = slab[:, k + d:k + d + t_max]

        # attn / img come from the LAST resolution group (original semantics).
        n_last = group_patches[-1].shape[0]
        t_last = group_patches[-1].shape[1]
        attn = attn_all[n_total - n_last:, :t_last]
        img = groups[-1]

        if return_backbone_feat:
            return output, output_, attn, img
        return output_, attn, img


# ---------------------------------- main ----------------------------------- #

if __name__ == "__main__":
    key = jax.random.PRNGKey(0)
    kw, kq, kh, kg0, kg1, kl0, kl1 = jax.random.split(key, 7)

    params = dict(
        w_patch=0.02 * jax.random.normal(
            kw, (PATCH * PATCH * IN_CHANNELS, EMBED_DIM), jnp.float32),
        b_patch=jnp.zeros((1, EMBED_DIM), jnp.float32),
        q=0.02 * jax.random.normal(kq, (1, EMBED_DIM), jnp.float32),
        w_head=0.02 * jax.random.normal(kh, (EMBED_DIM, HEAD_DIM), jnp.float32),
        b_head=jnp.zeros((1, HEAD_DIM), jnp.float32),
    )

    # Multi-crop input: 2 "global" crops (2,4,16,16) + 2 "local" crops (2,4,8,8).
    crops = [
        jax.random.normal(kg0, (2, IN_CHANNELS, 16, 16), jnp.float32),
        jax.random.normal(kg1, (2, IN_CHANNELS, 16, 16), jnp.float32),
        jax.random.normal(kl0, (2, IN_CHANNELS, 8, 8), jnp.float32),
        jax.random.normal(kl1, (2, IN_CHANNELS, 8, 8), jnp.float32),
    ]

    model = MultiCropWrapperMICM(params)

    output_, attn, img = model(crops)
    jax.block_until_ready((output_, attn, img))
    assert output_.shape == (8, HEAD_DIM)     # 4 crops x batch 2, head dim
    assert attn.shape == (4, 1)               # last (local) group: 4 rows, 1 patch
    assert img.shape == (4, IN_CHANNELS, 8, 8)

    feat, output2_, attn2, img2 = model(crops, return_backbone_feat=True)
    jax.block_until_ready((feat, output2_))
    assert feat.shape == (8, EMBED_DIM)
    assert output2_.shape == (8, HEAD_DIM)

    print("KERNEL_OK")
</pallas_src>

<mosaic_0001>
module attributes {stable_mosaic.version = 11 : i64} {
  func.func @_fused_kernel(%arg0: i32, %arg1: memref<32x256xbf16, #tpu.memory_space<vmem>>, %arg2: memref<8x4xf32, #tpu.memory_space<vmem>>, %arg3: memref<256x33xbf16, #tpu.memory_space<vmem>>, %arg4: memref<1x33xf32, #tpu.memory_space<vmem>>, %arg5: memref<32x64xf32, #tpu.memory_space<vmem>>, %arg6: memref<1x64xf32, #tpu.memory_space<vmem>>, %arg7: memref<8x128xf32, #tpu.memory_space<vmem>>) attributes {dimension_semantics = [#tpu.dimension_semantics<parallel>], iteration_bounds = array<i64: 1>, scalar_prefetch = 0 : i64, scratch_operands = 0 : i64, tpu.core_type = #tpu.core_type<tc>, window_params = [{transform_indices = @transform_0, window_bounds = array<i64: 32, 256>}, {transform_indices = @transform_1, window_bounds = array<i64: 8, 4>}, {pipeline_mode = #tpu.pipeline_mode<synchronous>, transform_indices = @transform_2, window_bounds = array<i64: 256, 33>}, {pipeline_mode = #tpu.pipeline_mode<synchronous>, transform_indices = @transform_3, window_bounds = array<i64: 1, 33>}, {pipeline_mode = #tpu.pipeline_mode<synchronous>, transform_indices = @transform_4, window_bounds = array<i64: 32, 64>}, {pipeline_mode = #tpu.pipeline_mode<synchronous>, transform_indices = @transform_5, window_bounds = array<i64: 1, 64>}, {transform_indices = @transform_6, window_bounds = array<i64: 8, 128>}]} {
    %c0 = arith.constant 0 : index
    %c0_0 = arith.constant 0 : index
    %0 = vector.load %arg1[%c0, %c0_0] : memref<32x256xbf16, #tpu.memory_space<vmem>>, vector<32x256xbf16>
    %c0_1 = arith.constant 0 : index
    %c0_2 = arith.constant 0 : index
    %1 = vector.load %arg3[%c0_1, %c0_2] : memref<256x33xbf16, #tpu.memory_space<vmem>>, vector<256x33xbf16>
    %cst = arith.constant dense<0.000000e+00> : vector<32x33xf32>
    %2 = tpu.matmul %0, %1, %cst {dimension_numbers = #tpu.dot_dimension_numbers<[1], [0], [0], [1], [0, 0, 1, 1], [], []>} : vector<32x256xbf16>, vector<256x33xbf16>, vector<32x33xf32> -> vector<32x33xf32>
    %c0_3 = arith.constant 0 : index
    %c0_4 = arith.constant 0 : index
    %3 = vector.load %arg4[%c0_3, %c0_4] : memref<1x33xf32, #tpu.memory_space<vmem>>, vector<1x33xf32>
    %4 = vector.broadcast %3 : vector<1x33xf32> to vector<32x33xf32>
    %5 = arith.addf %2, %4 : vector<32x33xf32>
    %6 = vector.shape_cast %5 : vector<32x33xf32> to vector<8x4x33xf32>
    %7 = vector.extract_strided_slice %6 {offsets = [0, 0, 0], sizes = [8, 4, 32], strides = [1, 1, 1]} : vector<8x4x33xf32> to vector<8x4x32xf32>
    %8 = vector.extract_strided_slice %6 {offsets = [0, 0, 32], sizes = [8, 4, 1], strides = [1, 1, 1]} : vector<8x4x33xf32> to vector<8x4x1xf32>
    %cst_5 = arith.constant dense<0.000000e+00> : vector<8x4xf32>
    %9 = vector.multi_reduction <add>, %8, %cst_5 [2] : vector<8x4x1xf32> to vector<8x4xf32>
    %c0_6 = arith.constant 0 : index
    %c0_7 = arith.constant 0 : index
    %10 = vector.load %arg2[%c0_6, %c0_7] : memref<8x4xf32, #tpu.memory_space<vmem>>, vector<8x4xf32>
    %11 = vector.shape_cast %10 : vector<8x4xf32> to vector<8x4x1xf32>
    %cst_8 = arith.constant dense<0.000000e+00> : vector<8xf32>
    %12 = vector.multi_reduction <add>, %10, %cst_8 [1] : vector<8x4xf32> to vector<8xf32>
    %13 = vector.shape_cast %12 : vector<8xf32> to vector<8x1xf32>
    %cst_9 = arith.constant 1.000000e+00 : f32
    %14 = vector.broadcast %cst_9 : f32 to vector<8x1xf32>
    %15 = arith.maximumf %13, %14 : vector<8x1xf32>
    %16 = vector.broadcast %11 : vector<8x4x1xf32> to vector<8x4x32xf32>
    %17 = arith.mulf %7, %16 : vector<8x4x32xf32>
    %cst_10 = arith.constant dense<0.000000e+00> : vector<8x32xf32>
    %18 = vector.multi_reduction <add>, %17, %cst_10 [1] : vector<8x4x32xf32> to vector<8x32xf32>
    %19 = vector.broadcast %15 : vector<8x1xf32> to vector<8x32xf32>
    %20 = arith.divf %18, %19 : vector<8x32xf32>
    %cst_11 = arith.constant 0.000000e+00 : f32
    %21 = vector.broadcast %cst_11 : f32 to vector<8x4xf32>
    %22 = arith.cmpf ogt, %10, %21 : vector<8x4xf32>
    %cst_12 = arith.constant -1.000000e+30 : f32
    %23 = vector.broadcast %cst_12 : f32 to vector<8x4xf32>
    %24 = arith.select %22, %9, %23 : vector<8x4xi1>, vector<8x4xf32>
    %cst_13 = arith.constant dense<0xFF800000> : vector<8xf32>
    %25 = vector.multi_reduction <maximumf>, %24, %cst_13 [1] : vector<8x4xf32> to vector<8xf32>
    %26 = vector.shape_cast %25 : vector<8xf32> to vector<8x1xf32>
    %27 = vector.broadcast %26 : vector<8x1xf32> to vector<8x4xf32>
    %28 = arith.subf %24, %27 : vector<8x4xf32>
    %29 = math.exp %28 : vector<8x4xf32>
    %30 = arith.mulf %29, %10 : vector<8x4xf32>
    %cst_14 = arith.constant dense<0.000000e+00> : vector<8xf32>
    %31 = vector.multi_reduction <add>, %30, %cst_14 [1] : vector<8x4xf32> to vector<8xf32>
    %32 = vector.shape_cast %31 : vector<8xf32> to vector<8x1xf32>
    %cst_15 = arith.constant 1.000000e-30 : f32
    %33 = vector.broadcast %cst_15 : f32 to vector<8x1xf32>
    %34 = arith.maximumf %32, %33 : vector<8x1xf32>
    %35 = vector.broadcast %34 : vector<8x1xf32> to vector<8x4xf32>
    %36 = arith.divf %30, %35 : vector<8x4xf32>
    %c0_16 = arith.constant 0 : index
    %c0_17 = arith.constant 0 : index
    %37 = vector.load %arg5[%c0_16, %c0_17] : memref<32x64xf32, #tpu.memory_space<vmem>>, vector<32x64xf32>
    %cst_18 = arith.constant dense<0.000000e+00> : vector<8x64xf32>
    %38 = tpu.matmul %20, %37, %cst_18 {dimension_numbers = #tpu.dot_dimension_numbers<[1], [0], [0], [1], [0, 0, 1, 1], [], []>} : vector<8x32xf32>, vector<32x64xf32>, vector<8x64xf32> -> vector<8x64xf32>
    %c0_19 = arith.constant 0 : index
    %c0_20 = arith.constant 0 : index
    %39 = vector.load %arg6[%c0_19, %c0_20] : memref<1x64xf32, #tpu.memory_space<vmem>>, vector<1x64xf32>
    %40 = vector.broadcast %39 : vector<1x64xf32> to vector<8x64xf32>
    %41 = arith.addf %38, %40 : vector<8x64xf32>
    %cst_21 = arith.constant 0.000000e+00 : f32
    %42 = vector.broadcast %cst_21 : f32 to vector<8x28xf32>
    %43 = tpu.concatenate %41, %20, %36, %42 in 1 : vector<8x64xf32>, vector<8x32xf32>, vector<8x4xf32>, vector<8x28xf32> -> vector<8x128xf32>
    %c0_22 = arith.constant 0 : index
    %c0_23 = arith.constant 0 : index
    %44 = vector.load %arg7[%c0_22, %c0_23] : memref<8x128xf32, #tpu.memory_space<vmem>>, vector<8x128xf32>
    tpu.vector_store %arg7[%c0_22, %c0_23], %43 {strides = array<i32>} : memref<8x128xf32, #tpu.memory_space<vmem>>, vector<8x128xf32>,
    return
  }
  func.func @transform_0(%arg0: i32) -> (i32, i32) {
    %c0_i32 = arith.constant 0 : i32
    %c0_i32_0 = arith.constant 0 : i32
    return %arg0, %c0_i32 : i32, i32
  }
  func.func @transform_1(%arg0: i32) -> (i32, i32) {
    %c0_i32 = arith.constant 0 : i32
    %c0_i32_0 = arith.constant 0 : i32
    return %arg0, %c0_i32 : i32, i32
  }
  func.func @transform_2(%arg0: i32) -> (i32, i32) {
    %c0_i32 = arith.constant 0 : i32
    %c0_i32_0 = arith.constant 0 : i32
    %c0_i32_1 = arith.constant 0 : i32
    return %c0_i32, %c0_i32_0 : i32, i32
  }
  func.func @transform_3(%arg0: i32) -> (i32, i32) {
    %c0_i32 = arith.constant 0 : i32
    %c0_i32_0 = arith.constant 0 : i32
    %c0_i32_1 = arith.constant 0 : i32
    return %c0_i32, %c0_i32_0 : i32, i32
  }
  func.func @transform_4(%arg0: i32) -> (i32, i32) {
    %c0_i32 = arith.constant 0 : i32
    %c0_i32_0 = arith.constant 0 : i32
    %c0_i32_1 = arith.constant 0 : i32
    return %c0_i32, %c0_i32_0 : i32, i32
  }
  func.func @transform_5(%arg0: i32) -> (i32, i32) {
    %c0_i32 = arith.constant 0 : i32
    %c0_i32_0 = arith.constant 0 : i32
    %c0_i32_1 = arith.constant 0 : i32
    return %c0_i32, %c0_i32_0 : i32, i32
  }
  func.func @transform_6(%arg0: i32) -> (i32, i32) {
    %c0_i32 = arith.constant 0 : i32
    %c0_i32_0 = arith.constant 0 : i32
    return %arg0, %c0_i32 : i32, i32
  }
}

</mosaic_0001>

<llo_original>
// kernel: tpu_custom_call.1
$region0: #{tpu_custom_call.1}
  #allocation0 [shape = 'u32[]', space=smem, size = 0x4, offset = 0x4, fixed_abs, tag = 'smem constant byte address 0x4 - core index']
  #allocation1 [shape = 'u32[144,128]{1,0:T(1,128)}', space=vmem, size = 0x12000, scoped, tag = 'internal scratch']
  %s0 = inlined_call_operand.vmem [shape: bf16[32,256], index: 0, kind: input, shape index: {}]
  %s1 = inlined_call_operand.vmem [shape: f32[8,4], index: 1, kind: input, shape index: {}]
  %s2 = inlined_call_operand.vmem [shape: bf16[256,33], index: 2, kind: input, shape index: {}]
  %s3 = inlined_call_operand.vmem [shape: f32[1,33], index: 3, kind: input, shape index: {}]
  %s4 = inlined_call_operand.vmem [shape: f32[32,64], index: 4, kind: input, shape index: {}]
  %s5 = inlined_call_operand.vmem [shape: f32[1,64], index: 5, kind: input, shape index: {}]
  %s6 = inlined_call_operand.hbm [shape: f32[8,128], index: 6, kind: output, shape index: {}]
  %s7 = sld [smem:[#allocation0]]
  $region34: #{tpu_custom_call.1} parent=0
    _
  %s9 = ssub.s32 1, %s7
  %s10 = scalar_select 0, %s9, %s7
  $region1: #{tpu_custom_call.1} parent=0
    #allocation2 [shape = 'u8[4096]{0}', space=vmem, size = 0x1000, scoped, tag = 'output window, operand 0, single buffered']
    #allocation3 [shape = 's32[1]{0}', space=sflag, size = 0x4, scoped, tag = 'scoped memory for tpu_custom_call.1']
    %11 = vsyncpa [#allocation3], 0
    // Predicated region
    $region2: #{tpu_custom_call.1} parent=1 // pred_check
      _
    $region3: #{tpu_custom_call.1} parent=1 // pred_check_branch
      %13 = sbr.rel (0) target = $region5
    $region4: #{tpu_custom_call.1} parent=1 // pred_region
      _
    $region5: #{tpu_custom_call.1} parent=1 // pred_fallthru
      _
    // Predicated region
    $region6: #{tpu_custom_call.1} parent=1 // pred_check
      _
    $region7: #{tpu_custom_call.1} parent=1 // pred_check_branch
      %15 = sbr.rel (0) target = $region9
    $region8: #{tpu_custom_call.1} parent=1 // pred_region
      _
    $region9: #{tpu_custom_call.1} parent=1 // pred_fallthru
      _
    // Predicated region
    $region10: #{tpu_custom_call.1} parent=1 // pred_check
      _
    $region11: #{tpu_custom_call.1} parent=1 // pred_check_branch
      %17 = sbr.rel (0) target = $region13
    $region12: #{tpu_custom_call.1} parent=1 // pred_region
      _
    $region13: #{tpu_custom_call.1} parent=1 // pred_fallthru
      _
    // Predicated region
    $region14: #{tpu_custom_call.1} parent=1 // pred_check
      _
    $region15: #{tpu_custom_call.1} parent=1 // pred_check_branch
      %19 = sbr.rel (0) target = $region17
    $region16: #{tpu_custom_call.1} parent=1 // pred_region
      _
    $region17: #{tpu_custom_call.1} parent=1 // pred_fallthru
      _
    // Predicated region
    $region18: #{tpu_custom_call.1} parent=1 // pred_check
      _
    $region19: #{tpu_custom_call.1} parent=1 // pred_check_branch
      %21 = sbr.rel (0) target = $region21
    $region20: #{tpu_custom_call.1} parent=1 // pred_region
      _
    $region21: #{tpu_custom_call.1} parent=1 // pred_fallthru
      _
    // Predicated region
    $region22: #{tpu_custom_call.1} parent=1 // pred_check
      _
    $region23: #{tpu_custom_call.1} parent=1 // pred_check_branch
      %23 = sbr.rel (0) target = $region25
    $region24: #{tpu_custom_call.1} parent=1 // pred_region
      _
    $region25: #{tpu_custom_call.1} parent=1 // pred_fallthru
      _
    %v25 = vld [vmem:[%s0] sm:$0xff]
    %v26 = vld [vmem:[%s0 + $0x8] sm:$0xff]
    %v27 = vld [vmem:[%s0 + $0x10] sm:$0xff]
    %v28 = vld [vmem:[%s0 + $0x18] sm:$0xff]
    %v29 = vld [vmem:[%s2] sm:$0xf]
    %v30 = vld [vmem:[%s2 + $0x4] sm:$0xf]
    %v31 = vld [vmem:[%s2 + $0x8] sm:$0xf]
    %v32 = vld [vmem:[%s2 + $0xc] sm:$0xf]
    %v33 = vld [vmem:[%s2 + $0x10] sm:$0xf]
    %v34 = vld [vmem:[%s2 + $0x14] sm:$0xf]
    %v35 = vld [vmem:[%s2 + $0x18] sm:$0xf]
    %v36 = vld [vmem:[%s2 + $0x1c] sm:$0xf]
    %v37 = vld [vmem:[%s2 + $0x20] sm:$0xf]
    %v38 = vld [vmem:[%s2 + $0x24] sm:$0xf]
    %v39 = vld [vmem:[%s2 + $0x28] sm:$0xf]
    %v40 = vld [vmem:[%s2 + $0x2c] sm:$0xf]
    %v41 = vld [vmem:[%s2 + $0x30] sm:$0xf]
    %v42 = vld [vmem:[%s2 + $0x34] sm:$0xf]
    %v43 = vld [vmem:[%s2 + $0x38] sm:$0xf]
    %v44 = vld [vmem:[%s2 + $0x3c] sm:$0xf]
    %v45 = vld [vmem:[%s2 + $0x40] sm:$0xf]
    %v46 = vld [vmem:[%s2 + $0x44] sm:$0xf]
    %v47 = vld [vmem:[%s2 + $0x48] sm:$0xf]
    %v48 = vld [vmem:[%s2 + $0x4c] sm:$0xf]
    %v49 = vld [vmem:[%s2 + $0x50] sm:$0xf]
    %v50 = vld [vmem:[%s2 + $0x54] sm:$0xf]
    %v51 = vld [vmem:[%s2 + $0x58] sm:$0xf]
    %v52 = vld [vmem:[%s2 + $0x5c] sm:$0xf]
    %v53 = vld [vmem:[%s2 + $0x60] sm:$0xf]
    %v54 = vld [vmem:[%s2 + $0x64] sm:$0xf]
    %v55 = vld [vmem:[%s2 + $0x68] sm:$0xf]
    %v56 = vld [vmem:[%s2 + $0x6c] sm:$0xf]
    %v57 = vld [vmem:[%s2 + $0x70] sm:$0xf]
    %v58 = vld [vmem:[%s2 + $0x74] sm:$0xf]
    %v59 = vld [vmem:[%s2 + $0x78] sm:$0xf]
    %v60 = vld [vmem:[%s2 + $0x7c] sm:$0xf]
    %v61 = vld [vmem:[%s3] sm:$0x1]
    %v63 = vlaneseq
    %v64 = vshrl.u32 %v63, 7
    %v65 = vsub.s32 0, %v64
    %v66 = vrot.slane %v61, %v65
    %v72 = vunpack.c.l.b16 %v25
    %v73 = vunpack.c.h.b16 %v25
    %v74 = vunpack.c.l.b16 %v26
    %v75 = vunpack.c.h.b16 %v26
    %v76 = vunpack.c.l.b16 %v27
    %v77 = vunpack.c.h.b16 %v27
    %v78 = vunpack.c.l.b16 %v28
    %v79 = vunpack.c.h.b16 %v28
    %v80 = vpack.c.b16 %v74, %v72
    %v81 = vpack.c.b16 %v75, %v73
    %v82 = vpack.c.b16 %v78, %v76
    %v83 = vpack.c.b16 %v79, %v77
    %v120 = vunpack.c.l.b16 %v29
    %v121 = vunpack.c.l.b16 %v30
    %v122 = vunpack.c.l.b16 %v31
    %v123 = vunpack.c.l.b16 %v32
    %v124 = vunpack.c.l.b16 %v33
    %v125 = vunpack.c.l.b16 %v34
    %v126 = vunpack.c.l.b16 %v35
    %v127 = vunpack.c.l.b16 %v36
    %v128 = vunpack.c.l.b16 %v37
    %v129 = vunpack.c.l.b16 %v38
    %v130 = vunpack.c.l.b16 %v39
    %v131 = vunpack.c.l.b16 %v40
    %v132 = vunpack.c.l.b16 %v41
    %v133 = vunpack.c.l.b16 %v42
    %v134 = vunpack.c.l.b16 %v43
    %v135 = vunpack.c.l.b16 %v44
    %v136 = vunpack.c.l.b16 %v45
    %v137 = vunpack.c.l.b16 %v46
    %v138 = vunpack.c.l.b16 %v47
    %v139 = vunpack.c.l.b16 %v48
    %v140 = vunpack.c.l.b16 %v49
    %v141 = vunpack.c.l.b16 %v50
    %v142 = vunpack.c.l.b16 %v51
    %v143 = vunpack.c.l.b16 %v52
    %v144 = vunpack.c.l.b16 %v53
    %v145 = vunpack.c.l.b16 %v54
    %v146 = vunpack.c.l.b16 %v55
    %v147 = vunpack.c.l.b16 %v56
    %v148 = vunpack.c.l.b16 %v57
    %v149 = vunpack.c.l.b16 %v58
    %v150 = vunpack.c.l.b16 %v59
    %v151 = vunpack.c.l.b16 %v60
    %v152 = vpack.c.b16 %v121, %v120
    %v153 = vpack.c.b16 %v123, %v122
    %v154 = vpack.c.b16 %v125, %v124
    %v155 = vpack.c.b16 %v127, %v126
    %v156 = vpack.c.b16 %v129, %v128
    %v157 = vpack.c.b16 %v131, %v130
    %v158 = vpack.c.b16 %v133, %v132
    %v159 = vpack.c.b16 %v135, %v134
    %v160 = vpack.c.b16 %v137, %v136
    %v161 = vpack.c.b16 %v139, %v138
    %v162 = vpack.c.b16 %v141, %v140
    %v163 = vpack.c.b16 %v143, %v142
    %v164 = vpack.c.b16 %v145, %v144
    %v165 = vpack.c.b16 %v147, %v146
    %v166 = vpack.c.b16 %v149, %v148
    %v167 = vpack.c.b16 %v151, %v150
    %184 = vmatprep.subr.bf16.mxu0 0
    %185 = vmatpush1.bf16.msra.mxu0 %v159
    %186 = vmatprep.subr.bf16.mxu0 0
    %187 = vmatpush1.bf16.msra.mxu0 %v158
    %188 = vmatprep.subr.bf16.mxu0 0
    %189 = vmatpush1.bf16.msra.mxu0 %v157
    %190 = vmatprep.subr.bf16.mxu0 0
    %191 = vmatpush1.bf16.msra.mxu0 %v156
    %192 = vmatprep.subr.bf16.mxu0 0
    %193 = vmatpush1.bf16.msra.mxu0 %v155
    %194 = vmatprep.subr.bf16.mxu0 0
    %195 = vmatpush1.bf16.msra.mxu0 %v154
    %196 = vmatprep.subr.bf16.mxu0 0
    %197 = vmatpush1.bf16.msra.mxu0 %v153
    %198 = vmatprep.subr.bf16.mxu0 0
    %199 = vmatpush1.bf16.msra.mxu0 %v152
    %200 = vmatprep.subr.bf16.mxu0 0
    %201 = vmatpush2.bf16.msra.mxu0 %v167
    %202 = vmatprep.subr.bf16.mxu0 0
    %203 = vmatpush2.bf16.msra.mxu0 %v166
    %204 = vmatprep.subr.bf16.mxu0 0
    %205 = vmatpush2.bf16.msra.mxu0 %v165
    %206 = vmatprep.subr.bf16.mxu0 0
    %207 = vmatpush2.bf16.msra.mxu0 %v164
    %208 = vmatprep.subr.bf16.mxu0 0
    %209 = vmatpush2.bf16.msra.mxu0 %v163
    %210 = vmatprep.subr.bf16.mxu0 0
    %211 = vmatpush2.bf16.msra.mxu0 %v162
    %212 = vmatprep.subr.bf16.mxu0 0
    %213 = vmatpush2.bf16.msra.mxu0 %v161
    %214 = vmatprep.subr.bf16.mxu0 0
    %215 = vmatpush2.bf16.msra.mxu0 %v160
    %216 = vmatprep.mubr.bf16.mxu0 %v81
    %217 = vmatmul.mubr.bf16.gmra.mxu0 %v80
    %v218 = vpop.f32.mrf.mxu0
    %v219 = vadd.f32 %v66, %v218
    %v220 = vpop.f32.mrf.mxu0
    %v221 = vpop.f32.mrf.mxu0
    %v222 = vadd.f32 %v66, %v221
    %v223 = vpop.f32.mrf.mxu0
    %224 = vmatprep.mubr.bf16.mxu0 %v83
    %225 = vmatmul.mubr.bf16.gmra.mxu0 %v82
    %v226 = vpop.f32.mrf.mxu0
    %v227 = vadd.f32 %v66, %v226
    %v228 = vpop.f32.mrf.mxu0
    %v229 = vpop.f32.mrf.mxu0
    %v230 = vadd.f32 %v66, %v229
    %v231 = vpop.f32.mrf.mxu0
    %232 = vdwg.mxu0
    %v237 = vcombine.high %v219, %v219
    %v238 = vcombine.high %v222, %v222
    %v239 = vcombine.high %v227, %v227
    %v240 = vcombine.high %v230, %v230
    %v245 = vadd.f32 %v219, 0.0
    %v246 = vadd.f32 %v237, 0.0
    %v247 = vadd.f32 %v222, 0.0
    %v248 = vadd.f32 %v238, 0.0
    %v249 = vadd.f32 %v227, 0.0
    %v250 = vadd.f32 %v239, 0.0
    %v251 = vadd.f32 %v230, 0.0
    %v252 = vadd.f32 %v240, 0.0
    %v253 = vld [vmem:[%s1] sm:$0xff]
    %v254 = vlaneseq
    %v255 = vshrl.u32 %v254, 7
    %v256 = vsub.s32 0, %v255
    %v257 = vrot.slane %v253, %v256
    %259 = vbcast.lane.b32.xlu0 %v257, 256
    %v260 = vpop.permute.xlu0 %259
    %v261 = vlaneseq
    %v262 = vshrl.u32 %v261, 7
    %v263 = vsub.s32 1, %v262
    %v264 = vrot.slane %v253, %v263
    %266 = vbcast.lane.b32.xlu0 %v264, 256
    %v267 = vpop.permute.xlu0 %266
    %v268 = vlaneseq
    %v269 = vshrl.u32 %v268, 7
    %v270 = vsub.s32 2, %v269
    %v271 = vrot.slane %v253, %v270
    %273 = vbcast.lane.b32.xlu0 %v271, 256
    %v274 = vpop.permute.xlu0 %273
    %v275 = vlaneseq
    %v276 = vshrl.u32 %v275, 7
    %v277 = vsub.s32 3, %v276
    %v278 = vrot.slane %v253, %v277
    %280 = vbcast.lane.b32.xlu0 %v278, 256
    %v281 = vpop.permute.xlu0 %280
    %v282 = vlaneseq
    %v283 = vshrl.u32 %v282, 7
    %v284 = vsub.s32 4, %v283
    %v285 = vrot.slane %v253, %v284
    %287 = vbcast.lane.b32.xlu0 %v285, 256
    %v288 = vpop.permute.xlu0 %287
    %v289 = vlaneseq
    %v290 = vshrl.u32 %v289, 7
    %v291 = vsub.s32 5, %v290
    %v292 = vrot.slane %v253, %v291
    %294 = vbcast.lane.b32.xlu0 %v292, 256
    %v295 = vpop.permute.xlu0 %294
    %v296 = vlaneseq
    %v297 = vshrl.u32 %v296, 7
    %v298 = vsub.s32 6, %v297
    %v299 = vrot.slane %v253, %v298
    %301 = vbcast.lane.b32.xlu0 %v299, 256
    %v302 = vpop.permute.xlu0 %301
    %v303 = vlaneseq
    %v304 = vshrl.u32 %v303, 7
    %v305 = vsub.s32 7, %v304
    %v306 = vrot.slane %v253, %v305
    %308 = vbcast.lane.b32.xlu0 %v306, 256
    %v309 = vpop.permute.xlu0 %308
    %vm310 = vcmask 31744
    %v311 = vsel %vm310, %v253, 0.0
    %312 = vadd.xlane.f32.xlu0 %v311
    %v313 = vpop.xlane.xlu0 %312
    %v314 = vmax.f32 %v313, 1.0
    %v315 = vmul.f32 %v219, %v260
    %v316 = vmul.f32 %v237, %v267
    %v317 = vmul.f32 %v222, %v274
    %v318 = vmul.f32 %v238, %v281
    %v319 = vmul.f32 %v227, %v288
    %v320 = vmul.f32 %v239, %v295
    %v321 = vmul.f32 %v230, %v302
    %v322 = vmul.f32 %v240, %v309
    %vm323 = vcmask 257024
    %v324 = vsel %vm323, %v315, 0.0
    %v325 = vrot.slane %v324, 4
    %v326 = vadd.f32 %v324, %v325
    %v327 = vrot.slane %v326, 2
    %v328 = vadd.f32 %v326, %v327
    %v329 = vrot.slane %v328, 1
    %v330 = vadd.f32 %v328, %v329
    %v331 = vsel %vm323, %v316, 0.0
    %v332 = vrot.slane %v331, 4
    %v333 = vadd.f32 %v331, %v332
    %v334 = vrot.slane %v333, 2
    %v335 = vadd.f32 %v333, %v334
    %v336 = vrot.slane %v335, 1
    %v337 = vadd.f32 %v335, %v336
    %v338 = vsel %vm323, %v317, 0.0
    %v339 = vrot.slane %v338, 4
    %v340 = vadd.f32 %v338, %v339
    %v341 = vrot.slane %v340, 2
    %v342 = vadd.f32 %v340, %v341
    %v343 = vrot.slane %v342, 1
    %v344 = vadd.f32 %v342, %v343
    %v345 = vsel %vm323, %v318, 0.0
    %v346 = vrot.slane %v345, 4
    %v347 = vadd.f32 %v345, %v346
    %v348 = vrot.slane %v347, 2
    %v349 = vadd.f32 %v347, %v348
    %v350 = vrot.slane %v349, 1
    %v351 = vadd.f32 %v349, %v350
    %v352 = vsel %vm323, %v319, 0.0
    %v353 = vrot.slane %v352, 4
    %v354 = vadd.f32 %v352, %v353
    %v355 = vrot.slane %v354, 2
    %v356 = vadd.f32 %v354, %v355
    %v357 = vrot.slane %v356, 1
    %v358 = vadd.f32 %v356, %v357
    %v359 = vsel %vm323, %v320, 0.0
    %v360 = vrot.slane %v359, 4
    %v361 = vadd.f32 %v359, %v360
    %v362 = vrot.slane %v361, 2
    %v363 = vadd.f32 %v361, %v362
    %v364 = vrot.slane %v363, 1
    %v365 = vadd.f32 %v363, %v364
    %v366 = vsel %vm323, %v321, 0.0
    %v367 = vrot.slane %v366, 4
    %v368 = vadd.f32 %v366, %v367
    %v369 = vrot.slane %v368, 2
    %v370 = vadd.f32 %v368, %v369
    %v371 = vrot.slane %v370, 1
    %v372 = vadd.f32 %v370, %v371
    %v373 = vsel %vm323, %v322, 0.0
    %v374 = vrot.slane %v373, 4
    %v375 = vadd.f32 %v373, %v374
    %v376 = vrot.slane %v375, 2
    %v377 = vadd.f32 %v375, %v376
    %v378 = vrot.slane %v377, 1
    %v379 = vadd.f32 %v377, %v378
    %v381 = vrot.slane %v314, 1
    %v382 = vrot.slane %v314, 2
    %v383 = vrot.slane %v314, 3
    %v384 = vrot.slane %v314, 4
    %v385 = vrot.slane %v314, 5
    %v386 = vrot.slane %v314, 6
    %v387 = vrot.slane %v314, 7
    %v396 = vrcp.pop %v314
    %v397 = vmul.f32 %v330, %v396
    %v398 = vrcp.pop %v381
    %v399 = vmul.f32 %v337, %v398
    %v400 = vrcp.pop %v382
    %v401 = vmul.f32 %v344, %v400
    %v402 = vrcp.pop %v383
    %v403 = vmul.f32 %v351, %v402
    %v404 = vrcp.pop %v384
    %v405 = vmul.f32 %v358, %v404
    %v406 = vrcp.pop %v385
    %v407 = vmul.f32 %v365, %v406
    %v408 = vrcp.pop %v386
    %v409 = vmul.f32 %v372, %v408
    %v410 = vrcp.pop %v387
    %v411 = vmul.f32 %v379, %v410
    %vm412 = vcmp.gt.f32.partialorder %v253, 0.0
    %421 = vset.pattern.permute.xlu0 32
    %422 = vperm.xlu0 %421, %v245
    %v423 = vpop.permute.xlu0 %422
    %424 = vset.pattern.permute.xlu0 32
    %425 = vperm.xlu0 %424, %v246
    %v426 = vpop.permute.xlu0 %425
    %427 = vset.pattern.permute.xlu0 32
    %428 = vperm.xlu0 %427, %v247
    %v429 = vpop.permute.xlu0 %428
    %430 = vset.pattern.permute.xlu0 32
    %431 = vperm.xlu0 %430, %v248
    %v432 = vpop.permute.xlu0 %431
    %433 = vset.pattern.permute.xlu0 32
    %434 = vperm.xlu0 %433, %v249
    %v435 = vpop.permute.xlu0 %434
    %436 = vset.pattern.permute.xlu0 32
    %437 = vperm.xlu0 %436, %v250
    %v438 = vpop.permute.xlu0 %437
    %439 = vset.pattern.permute.xlu0 32
    %440 = vperm.xlu0 %439, %v251
    %v441 = vpop.permute.xlu0 %440
    %442 = vset.pattern.permute.xlu0 32
    %443 = vperm.xlu0 %442, %v252
    %v444 = vpop.permute.xlu0 %443
    %v445 = vlaneseq
    %v446 = vand.u32 %v445, 127
    %v447 = vlaneseq
    %v448 = vshrl.u32 %v447, 7
    %v449 = vsub.s32 %v446, %v448
    %v450 = vrot.slane %v423, %v449
    %v451 = vlaneseq
    %v452 = vshrl.u32 %v451, 7
    %v453 = vsub.s32 %v446, %v452
    %v454 = vrot.slane %v426, %v453
    %v455 = vlaneseq
    %v456 = vshrl.u32 %v455, 7
    %v457 = vsub.s32 %v446, %v456
    %v458 = vrot.slane %v429, %v457
    %v459 = vlaneseq
    %v460 = vshrl.u32 %v459, 7
    %v461 = vsub.s32 %v446, %v460
    %v462 = vrot.slane %v432, %v461
    %v463 = vlaneseq
    %v464 = vshrl.u32 %v463, 7
    %v465 = vsub.s32 %v446, %v464
    %v466 = vrot.slane %v435, %v465
    %v467 = vlaneseq
    %v468 = vshrl.u32 %v467, 7
    %v469 = vsub.s32 %v446, %v468
    %v470 = vrot.slane %v438, %v469
    %v471 = vlaneseq
    %v472 = vshrl.u32 %v471, 7
    %v473 = vsub.s32 %v446, %v472
    %v474 = vrot.slane %v441, %v473
    %v475 = vlaneseq
    %v476 = vshrl.u32 %v475, 7
    %v477 = vsub.s32 %v446, %v476
    %v478 = vrot.slane %v444, %v477
    %vm479 = vcmask 1041409
    %v480 = vsel %vm479, %v454, %v450
    %vm481 = vcmask 1042434
    %v482 = vsel %vm481, %v458, %v480
    %vm483 = vcmask 1043459
    %v484 = vsel %vm483, %v462, %v482
    %vm485 = vcmask 1044484
    %v486 = vsel %vm485, %v466, %v484
    %vm487 = vcmask 1045509
    %v488 = vsel %vm487, %v470, %v486
    %vm489 = vcmask 1046534
    %v490 = vsel %vm489, %v474, %v488
    %vm491 = vcmask 1047559
    %v492 = vsel %vm491, %v478, %v490
    %v494 = vsel %vm412, %v492, -1e+30
    %v495 = vsel %vm310, %v494, -inf
    %496 = vmax.xlane.f32.xlu0 %v495
    %v497 = vpop.xlane.xlu0 %496
    %v498 = vsub.f32 %v494, %v497
    %v499 = vmul.f32 %v498, 1.442695
    %v500 = vpow.pop %v499
    %v501 = vmul.f32 %v500, %v253
    %v502 = vsel %vm310, %v501, 0.0
    %503 = vadd.xlane.f32.xlu0 %v502
    %v504 = vpop.xlane.xlu0 %503
    %v505 = vmax.f32 %v504, 1e-30
    %v506 = vrcp.pop %v505
    %v507 = vmul.f32 %v501, %v506
    %v508 = vld [vmem:[%s4] sm:$0xff]
    %v509 = vld [vmem:[%s4 + $0x8] sm:$0xff]
    %v510 = vld [vmem:[%s4 + $0x10] sm:$0xff]
    %v511 = vld [vmem:[%s4 + $0x18] sm:$0xff]
    %v512 = vld [vmem:[%s5] sm:$0x1]
    %v514 = vlaneseq
    %v515 = vshrl.u32 %v514, 7
    %v516 = vsub.s32 0, %v515
    %v517 = vrot.slane %v512, %v516
    %v527 = vrot.slane %v399, 7
    %v528 = vsel %vm479, %v527, %v397
    %v529 = vrot.slane %v401, 6
    %v530 = vsel %vm481, %v529, %v528
    %v531 = vrot.slane %v403, 5
    %v532 = vsel %vm483, %v531, %v530
    %v533 = vrot.slane %v405, 4
    %v534 = vsel %vm485, %v533, %v532
    %v535 = vrot.slane %v407, 3
    %v536 = vsel %vm487, %v535, %v534
    %v537 = vrot.slane %v409, 2
    %v538 = vsel %vm489, %v537, %v536
    %v539 = vrot.slane %v411, 1
    %v540 = vsel %vm491, %v539, %v538
    %vm541 = vcmask 261120
    %v542 = vsel %vm541, %v540, 0
    %544 = vmatprep.subr.mxu0 0.0
    %545 = vmatpush1.msra.mxu0 0.0
    %546 = vmatprep.subr.mxu0 0.0
    %547 = vmatpush1.msra.mxu0 0.0
    %548 = vmatprep.subr.mxu0 0.0
    %549 = vmatpush1.msra.mxu0 0.0
    %550 = vmatprep.subr.mxu0 0.0
    %551 = vmatpush1.msra.mxu0 0.0
    %552 = vmatprep.subr.mxu0 0.0
    %553 = vmatpush1.msra.mxu0 0.0
    %554 = vmatprep.subr.mxu0 0.0
    %555 = vmatpush1.msra.mxu0 0.0
    %556 = vmatprep.subr.mxu0 0.0
    %557 = vmatpush1.msra.mxu0 0.0
    %558 = vmatprep.subr.mxu0 0.0
    %559 = vmatpush1.msra.mxu0 0.0
    %560 = vmatprep.subr.mxu0 0.0
    %561 = vmatpush1.msra.mxu0 0.0
    %562 = vmatprep.subr.mxu0 0.0
    %563 = vmatpush1.msra.mxu0 0.0
    %564 = vmatprep.subr.mxu0 0.0
    %565 = vmatpush1.msra.mxu0 0.0
    %566 = vmatprep.subr.mxu0 0.0
    %567 = vmatpush1.msra.mxu0 0.0
    %568 = vmatprep.subr.mxu0 0.0
    %569 = vmatpush1.msra.mxu0 %v511
    %570 = vmatprep.subr.mxu0 0.0
    %571 = vmatpush1.msra.mxu0 %v510
    %572 = vmatprep.subr.mxu0 0.0
    %573 = vmatpush1.msra.mxu0 %v509
    %574 = vmatprep.subr.mxu0 0.0
    %575 = vmatpush1.msra.mxu0 %v508
    %576 = vmatprep.subr.mxu0 0.0
    %577 = vmatpush2.msra.mxu0 0.0
    %578 = vmatprep.subr.mxu0 0.0
    %579 = vmatpush2.msra.mxu0 0.0
    %580 = vmatprep.subr.mxu0 0.0
    %581 = vmatpush2.msra.mxu0 0.0
    %582 = vmatprep.subr.mxu0 0.0
    %583 = vmatpush2.msra.mxu0 0.0
    %584 = vmatprep.subr.mxu0 0.0
    %585 = vmatpush2.msra.mxu0 0.0
    %586 = vmatprep.subr.mxu0 0.0
    %587 = vmatpush2.msra.mxu0 0.0
    %588 = vmatprep.subr.mxu0 0.0
    %589 = vmatpush2.msra.mxu0 0.0
    %590 = vmatprep.subr.mxu0 0.0
    %591 = vmatpush2.msra.mxu0 0.0
    %592 = vmatprep.subr.mxu0 0.0
    %593 = vmatpush2.msra.mxu0 0.0
    %594 = vmatprep.subr.mxu0 0.0
    %595 = vmatpush2.msra.mxu0 0.0
    %596 = vmatprep.subr.mxu0 0.0
    %597 = vmatpush2.msra.mxu0 0.0
    %598 = vmatprep.subr.mxu0 0.0
    %599 = vmatpush2.msra.mxu0 0.0
    %600 = vmatprep.subr.mxu0 0.0
    %601 = vmatpush2.msra.mxu0 0.0
    %602 = vmatprep.subr.mxu0 0.0
    %603 = vmatpush2.msra.mxu0 0.0
    %604 = vmatprep.subr.mxu0 0.0
    %605 = vmatpush2.msra.mxu0 0.0
    %606 = vmatprep.subr.mxu0 0.0
    %607 = vmatpush2.msra.mxu0 0.0
    %608 = vmatprep.mubr.f32.mxu0 0.0
    %609 = vmatmul.mubr.f32.gmra.mxu0 %v542
    %v610 = vpop.f32.mrf.mxu0
    %v611 = vadd.f32 %v517, %v610
    %v612 = vpop.f32.mrf.mxu0
    %613 = vdwg.mxu0
    %614 = vrot.lane.b32.xlu0 %v540, 64
    %v615 = vpop.permute.xlu0 %614
    %618 = vrot.lane.b32.xlu0 %v507, 96
    %v619 = vpop.permute.xlu0 %618
    %vm621 = vcmask 523264
    %v622 = vsel %vm621, %v611, %v615
    %vm623 = vcmask 785408
    %v624 = vsel %vm623, %v622, %v619
    %vm625 = vcmask 818176
    %v626 = vsel %vm625, %v624, 0.0
    %627 = vst [vmem:[#allocation2] sm:$0xff] %v626
    // Predicated region
    $region26: #{tpu_custom_call.1} parent=1 // pred_check
      _
    $region27: #{tpu_custom_call.1} parent=1 // pred_check_branch
      %629 = sbr.rel (0) target = $region29
    $region28: #{tpu_custom_call.1} parent=1 // pred_region
      %s631 = ssub.s32 128, 128
      %632 = vsyncadd [#allocation3], %s631
      %s634 = sshll.u32 [#allocation2], 4
      %s635 = int_to_ptr.vmem [resolvable:$true] %s634
      %637 = dma.vmem_to_hbm [thread:$0]  %s635, 128, %s6, [#allocation3]
    $region29: #{tpu_custom_call.1} parent=1 // pred_fallthru
      _
    // Predicated region
    $region30: #{tpu_custom_call.1} parent=1 // pred_check
      _
    $region31: #{tpu_custom_call.1} parent=1 // pred_check_branch
      %639 = sbr.rel (0) target = $region33
    $region32: #{tpu_custom_call.1} parent=1 // pred_region
      %640 = dma.done [#allocation3], 128
    $region33: #{tpu_custom_call.1} parent=1 // pred_fallthru
      _
    %641 = vsyncpa [#allocation3], 1

</llo_original>
